<compile_context>
chip_gen: v5e
topology: v5e:2x2
jax: 0.10.0
libtpu: 0.0.40
codegen_flags: <defaults>
</compile_context>

<pallas_src>
import functools

import jax
import jax.numpy as jnp
from jax.experimental import pallas as pl
from jax.experimental.pallas import tpu as pltpu


def _round_up(x, m):
    return ((x + m - 1) // m) * m


def _logreg_kernel(x_ref, w_ref, b_ref, o_ref, *, out_dim):
    # x_ref: [TILE_B, IN] bf16, w_ref: [IN, OUT_PAD] bf16,
    # b_ref: [1, OUT] f32,     o_ref: [TILE_B, OUT] f32.
    x = x_ref[...]
    w = w_ref[...]
    # MXU matmul: bf16 x bf16 -> f32 accumulation (no in-kernel transpose).
    z = jnp.dot(x, w, preferred_element_type=jnp.float32)
    # Keep only the valid output columns; padded weight lanes never hit HBM.
    z = z[:, :out_dim] + b_ref[...]
    # Single-EUP sigmoid: sigmoid(z) = 0.5 * (1 + tanh(z / 2)).
    o_ref[...] = 0.5 * (1.0 + jnp.tanh(0.5 * z))


def prepare_logreg_params(weight, bias, *, lane_pad=128):
    """One-time parameter prep (call at init time, not per forward).

    weight: [OUT, IN] (PyTorch convention), bias: [OUT]
    returns: w_t [IN, OUT_PAD] bf16 (pre-transposed, zero-padded),
             b2  [1, OUT] f32.
    """
    OUT, IN = weight.shape
    OUT_PAD = _round_up(max(OUT, 1), lane_pad)
    w_t = jnp.zeros((IN, OUT_PAD), jnp.bfloat16).at[:, :OUT].set(
        weight.T.astype(jnp.bfloat16))
    b2 = bias.astype(jnp.float32).reshape(1, OUT)
    return w_t, b2


def _clamp_tile_to_vmem(tile_b, in_dim, out_dim, out_pad,
                        budget_bytes=12 * 1024 * 1024):
    """Keep double-buffered tiles well under the smallest scoped-VMEM default."""
    while tile_b > 8:
        need = (2 * tile_b * in_dim * 2          # x tiles, bf16, double-buffered
                + 2 * tile_b * out_dim * 4       # out tiles, f32, double-buffered
                + 2 * in_dim * out_pad * 2       # pinned weight, bf16
                + 2 * 8 * _round_up(out_dim, 128) * 4)  # bias (padded estimate)
        if need <= budget_bytes:
            break
        tile_b = max(8, _round_up(tile_b // 2, 8))
    return tile_b


def logistic_regression_forward_prepared(feature, w_t, b2, *, out_dim,
                                         tile_b=1024):
    """feature: [B, IN]; w_t: [IN, OUT_PAD] bf16; b2: [1, OUT] f32 -> [B, OUT] f32."""
    B, IN = feature.shape
    IN_w, OUT_PAD = w_t.shape
    assert IN == IN_w
    OUT = out_dim

    # bf16 feed to the MXU; all post-matmul math stays on the f32 accumulator.
    x = feature.astype(jnp.bfloat16)

    # Sublane-align the batch only (no full-tile jnp.pad pass over x).
    B_PAD = _round_up(B, 8)
    if B_PAD != B:
        x = jnp.pad(x, ((0, B_PAD - B), (0, 0)))

    # Tile selection: aim for >= 2 tiles when B is large (v7x megacore),
    # cap at tile_b, and clamp against a conservative VMEM budget.
    TILE_B = min(tile_b, max(8, _round_up(pl.cdiv(B_PAD, 2), 8)))
    TILE_B = _clamp_tile_to_vmem(TILE_B, IN, OUT, OUT_PAD)
    grid = (pl.cdiv(B_PAD, TILE_B),)   # ragged last block handled by Pallas

    kernel = functools.partial(_logreg_kernel, out_dim=OUT)

    out = pl.pallas_call(
        kernel,
        out_shape=jax.ShapeDtypeStruct((B_PAD, OUT), jnp.float32),
        grid=grid,
        in_specs=[
            # x tile streams over B.
            pl.BlockSpec((TILE_B, IN), lambda i: (i, 0)),
            # weight / bias: constant block index -> pinned in VMEM, no re-DMA.
            pl.BlockSpec((IN, OUT_PAD), lambda i: (0, 0)),
            pl.BlockSpec((1, OUT), lambda i: (0, 0)),
        ],
        # Last dim == full array dim (OUT), so the (8,128) rule is satisfied and
        # only the valid OUT columns are ever written back to HBM.
        out_specs=pl.BlockSpec((TILE_B, OUT), lambda i: (i, 0)),
        compiler_params=pltpu.CompilerParams(
            dimension_semantics=("parallel",),   # shards B tiles across TCs on v7x
        ),
    )(x, w_t, b2)

    return out[:B] if B_PAD != B else out


def logistic_regression_forward(feature, weight, bias, *, tile_b=1024):
    """Convenience wrapper: feature [B, IN], weight [OUT, IN], bias [OUT] -> [B, OUT]."""
    w_t, b2 = prepare_logreg_params(weight, bias)
    return logistic_regression_forward_prepared(
        feature, w_t, b2, out_dim=weight.shape[0], tile_b=tile_b)


if __name__ == "__main__":
    # Small shapes implied by the module: batch=8, input_size=32, output_size=16.
    B, IN, OUT = 8, 32, 16

    key = jax.random.PRNGKey(0)
    k_x, k_w, k_b = jax.random.split(key, 3)

    # Deterministic parameter init (PyTorch nn.Linear-style uniform bound).
    bound = 1.0 / (IN ** 0.5)
    feature = jax.random.normal(k_x, (B, IN), dtype=jnp.float32)
    weight = jax.random.uniform(k_w, (OUT, IN), minval=-bound, maxval=bound,
                                dtype=jnp.float32)
    bias = jax.random.uniform(k_b, (OUT,), minval=-bound, maxval=bound,
                              dtype=jnp.float32)

    out = logistic_regression_forward(feature, weight, bias)
    out = jax.block_until_ready(out)
    assert out.shape == (B, OUT)

    # Tight check against a reference using the same bf16 input rounding
    # (MXU accumulates in f32, so this should match closely).
    x_bf = feature.astype(jnp.bfloat16).astype(jnp.float32)
    w_bf = weight.astype(jnp.bfloat16).astype(jnp.float32)
    ref_bf16 = jax.nn.sigmoid(x_bf @ w_bf.T + bias)
    assert jnp.allclose(out, ref_bf16, atol=1e-4, rtol=1e-4)

    # Loose semantic check against the full-f32 reference (bf16 input rounding
    # dominates the deviation).
    ref_f32 = jax.nn.sigmoid(feature @ weight.T + bias)
    assert jnp.allclose(out, ref_f32, atol=3e-2, rtol=3e-2)

    print("KERNEL_OK")
</pallas_src>

<mosaic_0001>
module attributes {stable_mosaic.version = 11 : i64} {
  func.func @_logreg_kernel(%arg0: i32, %arg1: memref<8x32xbf16, #tpu.memory_space<vmem>>, %arg2: memref<32x128xbf16, #tpu.memory_space<vmem>>, %arg3: memref<1x16xf32, #tpu.memory_space<vmem>>, %arg4: memref<8x16xf32, #tpu.memory_space<vmem>>) attributes {dimension_semantics = [#tpu.dimension_semantics<parallel>], iteration_bounds = array<i64: 1>, scalar_prefetch = 0 : i64, scratch_operands = 0 : i64, tpu.core_type = #tpu.core_type<tc>, window_params = [{transform_indices = @transform_0, window_bounds = array<i64: 8, 32>}, {pipeline_mode = #tpu.pipeline_mode<synchronous>, transform_indices = @transform_1, window_bounds = array<i64: 32, 128>}, {pipeline_mode = #tpu.pipeline_mode<synchronous>, transform_indices = @transform_2, window_bounds = array<i64: 1, 16>}, {transform_indices = @transform_3, window_bounds = array<i64: 8, 16>}]} {
    %c0 = arith.constant 0 : index
    %c0_0 = arith.constant 0 : index
    %0 = vector.load %arg1[%c0, %c0_0] : memref<8x32xbf16, #tpu.memory_space<vmem>>, vector<8x32xbf16>
    %c0_1 = arith.constant 0 : index
    %c0_2 = arith.constant 0 : index
    %1 = vector.load %arg2[%c0_1, %c0_2] : memref<32x128xbf16, #tpu.memory_space<vmem>>, vector<32x128xbf16>
    %cst = arith.constant dense<0.000000e+00> : vector<8x128xf32>
    %2 = tpu.matmul %0, %1, %cst {dimension_numbers = #tpu.dot_dimension_numbers<[1], [0], [0], [1], [0, 0, 1, 1], [], []>} : vector<8x32xbf16>, vector<32x128xbf16>, vector<8x128xf32> -> vector<8x128xf32>
    %3 = vector.extract_strided_slice %2 {offsets = [0, 0], sizes = [8, 16], strides = [1, 1]} : vector<8x128xf32> to vector<8x16xf32>
    %c0_3 = arith.constant 0 : index
    %c0_4 = arith.constant 0 : index
    %4 = vector.load %arg3[%c0_3, %c0_4] : memref<1x16xf32, #tpu.memory_space<vmem>>, vector<1x16xf32>
    %5 = vector.broadcast %4 : vector<1x16xf32> to vector<8x16xf32>
    %6 = arith.addf %3, %5 : vector<8x16xf32>
    %cst_5 = arith.constant 5.000000e-01 : f32
    %7 = vector.broadcast %cst_5 : f32 to vector<8x16xf32>
    %8 = arith.mulf %7, %6 : vector<8x16xf32>
    %9 = math.tanh %8 : vector<8x16xf32>
    %cst_6 = arith.constant 1.000000e+00 : f32
    %10 = vector.broadcast %cst_6 : f32 to vector<8x16xf32>
    %11 = arith.addf %10, %9 : vector<8x16xf32>
    %cst_7 = arith.constant 5.000000e-01 : f32
    %12 = vector.broadcast %cst_7 : f32 to vector<8x16xf32>
    %13 = arith.mulf %12, %11 : vector<8x16xf32>
    %c0_8 = arith.constant 0 : index
    %c0_9 = arith.constant 0 : index
    %14 = vector.load %arg4[%c0_8, %c0_9] : memref<8x16xf32, #tpu.memory_space<vmem>>, vector<8x16xf32>
    tpu.vector_store %arg4[%c0_8, %c0_9], %13 {strides = array<i32>} : memref<8x16xf32, #tpu.memory_space<vmem>>, vector<8x16xf32>,
    return
  }
  func.func @transform_0(%arg0: i32) -> (i32, i32) {
    %c0_i32 = arith.constant 0 : i32
    %c0_i32_0 = arith.constant 0 : i32
    return %arg0, %c0_i32 : i32, i32
  }
  func.func @transform_1(%arg0: i32) -> (i32, i32) {
    %c0_i32 = arith.constant 0 : i32
    %c0_i32_0 = arith.constant 0 : i32
    %c0_i32_1 = arith.constant 0 : i32
    return %c0_i32, %c0_i32_0 : i32, i32
  }
  func.func @transform_2(%arg0: i32) -> (i32, i32) {
    %c0_i32 = arith.constant 0 : i32
    %c0_i32_0 = arith.constant 0 : i32
    %c0_i32_1 = arith.constant 0 : i32
    return %c0_i32, %c0_i32_0 : i32, i32
  }
  func.func @transform_3(%arg0: i32) -> (i32, i32) {
    %c0_i32 = arith.constant 0 : i32
    %c0_i32_0 = arith.constant 0 : i32
    return %arg0, %c0_i32 : i32, i32
  }
}

</mosaic_0001>

<llo_original>
// kernel: tpu_custom_call.1
$region0: #{tpu_custom_call.1}
  #allocation0 [shape = 'u32[]', space=smem, size = 0x4, offset = 0x4, fixed_abs, tag = 'smem constant byte address 0x4 - core index']
  #allocation1 [shape = 'u32[72,128]{1,0:T(1,128)}', space=vmem, size = 0x9000, scoped, tag = 'internal scratch']
  %s0 = inlined_call_operand.hbm [shape: bf16[8,32], index: 0, kind: input, shape index: {}]
  %s1 = inlined_call_operand.hbm [shape: bf16[32,128], index: 1, kind: input, shape index: {}]
  %s2 = inlined_call_operand.vmem [shape: f32[1,16], index: 2, kind: input, shape index: {}]
  %s3 = inlined_call_operand.hbm [shape: f32[8,16], index: 3, kind: output, shape index: {}]
  %s4 = sld [smem:[#allocation0]]
  $region30: #{tpu_custom_call.1} parent=0
    _
  %s6 = ssub.s32 1, %s4
  %s7 = scalar_select 0, %s6, %s4
  $region1: #{tpu_custom_call.1} parent=0
    #allocation2 [shape = 'u8[2048]{0}', space=vmem, size = 0x800, scoped, tag = 'input window, operand 0, single buffered']
    #allocation3 [shape = 's32[1]{0}', space=sflag, size = 0x4, scoped, tag = 'scoped memory for tpu_custom_call.1']
    #allocation4 [shape = 's32[1]{0}', space=sflag, size = 0x4, scoped, tag = 'scoped memory for tpu_custom_call.1']
    #allocation5 [shape = 'u8[8192]{0}', space=vmem, size = 0x2000, scoped, tag = 'input window, operand 1, single buffered']
    #allocation6 [shape = 's32[1]{0}', space=sflag, size = 0x4, scoped, tag = 'scoped memory for tpu_custom_call.1']
    #allocation7 [shape = 'u8[4096]{0}', space=vmem, size = 0x1000, scoped, tag = 'output window, operand 0, single buffered']
    %8 = vsyncpa [#allocation3], 0
    %9 = vsyncpa [#allocation6], 0
    %10 = vsyncpa [#allocation4], 0
    // Predicated region
    $region2: #{tpu_custom_call.1} parent=1 // pred_check
      _
    $region3: #{tpu_custom_call.1} parent=1 // pred_check_branch
      %12 = sbr.rel (0) target = $region5
    $region4: #{tpu_custom_call.1} parent=1 // pred_region
      %14 = vsyncadd [#allocation3], 0
      %s16 = sshll.u32 %s0, 4
      %s17 = int_to_ptr.hbm [resolvable:$true] %s16
      %s18 = sshll.u32 [#allocation2], 4
      %s19 = int_to_ptr.vmem [resolvable:$true] %s18
      %21 = dma.hbm_to_vmem [thread:$0]  %s17, 64, %s19, [#allocation3]
    $region5: #{tpu_custom_call.1} parent=1 // pred_fallthru
      _
    // Predicated region
    $region6: #{tpu_custom_call.1} parent=1 // pred_check
      _
    $region7: #{tpu_custom_call.1} parent=1 // pred_check_branch
      %23 = sbr.rel (0) target = $region9
    $region8: #{tpu_custom_call.1} parent=1 // pred_region
      %25 = vsyncadd [#allocation6], 0
      %s26 = sshll.u32 %s1, 4
      %s27 = int_to_ptr.hbm [resolvable:$true] %s26
      %s28 = sshll.u32 [#allocation5], 4
      %s29 = int_to_ptr.vmem [resolvable:$true] %s28
      %34 = dma.hbm_to_vmem [thread:$0]  %s27, 256, %s29, [#allocation6], 64, 64, 4
    $region9: #{tpu_custom_call.1} parent=1 // pred_fallthru
      _
    // Predicated region
    $region10: #{tpu_custom_call.1} parent=1 // pred_check
      _
    $region11: #{tpu_custom_call.1} parent=1 // pred_check_branch
      %36 = sbr.rel (0) target = $region13
    $region12: #{tpu_custom_call.1} parent=1 // pred_region
      _
    $region13: #{tpu_custom_call.1} parent=1 // pred_fallthru
      _
    // Predicated region
    $region14: #{tpu_custom_call.1} parent=1 // pred_check
      _
    $region15: #{tpu_custom_call.1} parent=1 // pred_check_branch
      %38 = sbr.rel (0) target = $region17
    $region16: #{tpu_custom_call.1} parent=1 // pred_region
      %40 = dma.done [#allocation3], 64
    $region17: #{tpu_custom_call.1} parent=1 // pred_fallthru
      _
    // Predicated region
    $region18: #{tpu_custom_call.1} parent=1 // pred_check
      _
    $region19: #{tpu_custom_call.1} parent=1 // pred_check_branch
      %42 = sbr.rel (0) target = $region21
    $region20: #{tpu_custom_call.1} parent=1 // pred_region
      %44 = dma.done [#allocation6], 256
    $region21: #{tpu_custom_call.1} parent=1 // pred_fallthru
      _
    %v46 = vld [vmem:[#allocation2] sm:$0xf]
    %v47 = vld [vmem:[#allocation5] sm:$0xf]
    %v48 = vld [vmem:[#allocation5 + $0x4] sm:$0xf]
    %v49 = vld [vmem:[#allocation5 + $0x8] sm:$0xf]
    %v50 = vld [vmem:[#allocation5 + $0xc] sm:$0xf]
    %v55 = vunpack.c.l.b16 %v47
    %v56 = vunpack.c.l.b16 %v48
    %v57 = vunpack.c.l.b16 %v49
    %v58 = vunpack.c.l.b16 %v50
    %v59 = vpack.c.b16 %v56, %v55
    %v60 = vpack.c.b16 %v58, %v57
    %vm63 = vcmask 261120
    %v65 = vsel %vm63, %v46, 0
    %67 = vmatpush.bf16.msra.mxu0 0
    %68 = vmatpush.bf16.msra.mxu0 0
    %69 = vmatpush.bf16.msra.mxu0 0
    %70 = vmatpush.bf16.msra.mxu0 0
    %71 = vmatpush.bf16.msra.mxu0 0
    %72 = vmatpush.bf16.msra.mxu0 0
    %73 = vmatpush.bf16.msra.mxu0 %v60
    %74 = vmatpush.bf16.msra.mxu0 %v59
    %75 = vmatmul.bf16.gmra.mxu0 %v65
    %v76 = vpop.f32.mrf.mxu0
    %v77 = vadd.f32 0.0, %v76
    %v78 = vpop.f32.mrf.mxu0
    %79 = vdwg.mxu0
    %v80 = vld [vmem:[%s2] sm:$0x1]
    %v82 = vperm.slane %v80, 0
    %v84 = vadd.f32 %v77, %v82
    %v85 = vmul.f32 %v84, 0.5
    %v86 = vtanh.pop %v85
    %v87 = vadd.f32 %v86, 1.0
    %v88 = vmul.f32 %v87, 0.5
    %vm89 = vcmask 130048
    %90 = vst.msk [vmem:[#allocation7] sm:$0xff] %vm89, %v88
    // Predicated region
    $region22: #{tpu_custom_call.1} parent=1 // pred_check
      _
    $region23: #{tpu_custom_call.1} parent=1 // pred_check_branch
      %92 = sbr.rel (0) target = $region25
    $region24: #{tpu_custom_call.1} parent=1 // pred_region
      %94 = vsyncadd [#allocation4], 0
      %s96 = sshll.u32 [#allocation7], 4
      %s97 = int_to_ptr.vmem [resolvable:$true] %s96
      %s98 = sshll.u32 %s3, 4
      %s99 = int_to_ptr.hbm [resolvable:$true] %s98
      %101 = dma.vmem_to_hbm [thread:$0]  %s97, 128, %s99, [#allocation4]
    $region25: #{tpu_custom_call.1} parent=1 // pred_fallthru
      _
    // Predicated region
    $region26: #{tpu_custom_call.1} parent=1 // pred_check
      _
    $region27: #{tpu_custom_call.1} parent=1 // pred_check_branch
      %103 = sbr.rel (0) target = $region29
    $region28: #{tpu_custom_call.1} parent=1 // pred_region
      %105 = dma.done [#allocation4], 128
    $region29: #{tpu_custom_call.1} parent=1 // pred_fallthru
      _
    %106 = vsyncpa [#allocation3], 1
    %107 = vsyncpa [#allocation6], 1
    %108 = vsyncpa [#allocation4], 1

</llo_original>
